<compile_context>
chip_gen: v7x
topology: tpu7x:2x2x1
jax: 0.10.0
libtpu: 0.0.40
codegen_flags: <defaults>
</compile_context>

<pallas_src>
import functools

import jax
import jax.numpy as jnp
from jax import lax
from jax.experimental import pallas as pl
from jax.experimental.pallas import tpu as pltpu


def _round_up(x, n):
    return ((x + n - 1) // n) * n


def _cdiv(a, b):
    return -(-a // b)


_UNROLL_MAX_HIDDEN = 8  # statically unroll the hidden chain up to this depth


def _fused_skip_mlp_kernel(n_hidden, unroll, x_ref, w_in_ref, w_h_ref,
                           w_out_ref, o_ref):
    """Fused forward on one batch tile: out = x @ W_in' @ (W_h')^L @ W_out'.

    The beta*I skips are already folded into the prepared weights, so every
    layer is one MXU matmul with f32 accumulation.

      x_ref     : [TB, d]       f32 activations (no feature padding)
      w_in_ref  : [d, Pm]       prepared input weight   (w_in.T  + beta*I)
      w_h_ref   : [Lp, Pm, Pm]  prepared hidden weights (w_h.T   + beta*I)
      w_out_ref : [Pm, Pk]      prepared output weight  (w_out.T + beta*I)
      o_ref     : [TB, Pk]      f32 output tile (true data in first k cols)
    """
    cdt = w_in_ref.dtype  # MXU input dtype (f32, or bf16 fast path)
    h = jnp.dot(x_ref[...].astype(cdt), w_in_ref[...],
                preferred_element_type=jnp.float32)              # [TB, Pm]
    if n_hidden > 0:
        if unroll:
            for l in range(n_hidden):
                h = jnp.dot(h.astype(cdt), w_h_ref[l],
                            preferred_element_type=jnp.float32)
        else:
            def body(l, acc):
                return jnp.dot(acc.astype(cdt), w_h_ref[l],
                               preferred_element_type=jnp.float32)
            h = lax.fori_loop(0, n_hidden, body, h)
    o_ref[...] = jnp.dot(h.astype(cdt), w_out_ref[...],
                         preferred_element_type=jnp.float32).astype(o_ref.dtype)


def prepare_params(w_in, w_hidden, w_out, beta=1.0, compute_dtype=jnp.float32):
    """One-time weight prep, hoisted out of the per-call path.

    Transposes to [d_in, d_out], folds beta*I_rect into the weight, pads the
    lane (output) dims to multiples of 128, stacks hidden layers and casts to
    the compute dtype.  Cache the result; re-run only when weights change.
    """
    m, d = w_in.shape
    k = w_out.shape[0]
    assert w_out.shape == (k, m)
    for w_h in w_hidden:
        assert w_h.shape == (m, m)

    Pm = _round_up(m, 128)
    Pk = _round_up(k, 128)

    def fold_pad(w, d_in, d_out, p_in, p_out):
        wt = jnp.asarray(w, jnp.float32).T                     # [d_in, d_out]
        wt = wt + beta * jnp.eye(d_in, d_out, dtype=jnp.float32)
        wt = jnp.pad(wt, ((0, p_in - d_in), (0, p_out - d_out)))
        return wt.astype(compute_dtype)

    w_in_p = fold_pad(w_in, d, m, d, Pm)                       # [d, Pm]
    if len(w_hidden) > 0:
        w_h_p = jnp.stack([fold_pad(w, m, m, Pm, Pm) for w in w_hidden])
    else:
        w_h_p = jnp.zeros((1, Pm, Pm), compute_dtype)          # dummy, unused
    w_out_p = fold_pad(w_out, m, k, Pm, Pk)                    # [Pm, Pk]

    meta = dict(d=d, m=m, k=k, L=len(w_hidden), Pm=Pm, Pk=Pk)
    return (w_in_p, w_h_p, w_out_p), meta


def _vmem_limit_bytes(need_bytes):
    """Generation-aware VMEM request: capped at physical capacity - headroom."""
    cap = 64 << 20
    try:
        cap = int(getattr(pltpu.get_tpu_info(), "vmem_capacity_bytes", cap))
    except Exception:
        pass
    headroom = 16 << 20
    return int(min(max(need_bytes, 32 << 20), max(cap - headroom, 32 << 20)))


def linear_skip_nn_forward_prepared(x, prepared, meta, *, block_b=512):
    """Forward pass using pre-prepared (folded/padded/stacked) weights."""
    w_in_p, w_h_p, w_out_p = prepared
    d, k, Pm, Pk, L = meta["d"], meta["k"], meta["Pm"], meta["Pk"], meta["L"]
    B = x.shape[0]
    assert x.shape == (B, d)

    x = jnp.asarray(x, jnp.float32)
    # Pad batch only up to a sublane multiple of 8 (tiny); uneven final tiles
    # are handled by Pallas partial blocks.  No feature-dim padding of x.
    B8 = _round_up(max(B, 8), 8)
    if B8 != B:
        x = jnp.pad(x, ((0, B8 - B), (0, 0)))

    # Balanced batch tiles; >= 2 tiles when possible so v7x's second
    # TensorCore gets work via dimension_semantics=("parallel",).
    n_tiles = max(_cdiv(B8, block_b), 2 if B8 >= 16 else 1)
    TB = _round_up(_cdiv(B8, n_tiles), 8)
    grid = (_cdiv(B8, TB),)

    unroll = L <= _UNROLL_MAX_HIDDEN
    kernel = functools.partial(_fused_skip_mlp_kernel, L, unroll)

    w_bytes = (w_in_p.size * w_in_p.dtype.itemsize
               + w_h_p.size * w_h_p.dtype.itemsize
               + w_out_p.size * w_out_p.dtype.itemsize)

    def run(single_buffer_weights):
        def w_spec(block_shape):
            nd = len(block_shape)

            def idx(i):
                return (0,) * nd

            if single_buffer_weights and hasattr(pl, "Buffered"):
                try:
                    # Constant index_map => single buffer is enough; halves
                    # resident-weight VMEM (matters on v7x's 64 MiB).
                    return pl.BlockSpec(block_shape, idx,
                                        pipeline_mode=pl.Buffered(1))
                except TypeError:
                    pass
            return pl.BlockSpec(block_shape, idx)

        w_buf = 1 if single_buffer_weights else 2
        need = (w_buf * w_bytes                              # resident weights
                + 2 * TB * _round_up(d, 128) * 4             # x tiles (2 bufs)
                + 2 * TB * Pk * 4                            # out tiles (2 bufs)
                + 2 * TB * Pm * 4                            # live activation
                + (2 << 20))                                  # slack

        return pl.pallas_call(
            kernel,
            out_shape=jax.ShapeDtypeStruct((B8, Pk), jnp.float32),
            grid=grid,
            in_specs=[
                pl.BlockSpec((TB, d), lambda i: (i, 0)),      # batch-tiled x
                w_spec(w_in_p.shape),                         # resident weights
                w_spec(w_h_p.shape),
                w_spec(w_out_p.shape),
            ],
            out_specs=pl.BlockSpec((TB, Pk), lambda i: (i, 0)),
            compiler_params=pltpu.CompilerParams(
                dimension_semantics=("parallel",),
                vmem_limit_bytes=_vmem_limit_bytes(need),
            ),
        )(x, w_in_p, w_h_p, w_out_p)

    try:
        out_pad = run(True)
    except Exception:
        # Fallback if single-buffered weight specs are rejected by this
        # JAX/Mosaic version.
        out_pad = run(False)

    return out_pad[:B, :k]


def linear_skip_nn_forward(x, w_in, w_hidden, w_out, beta=1.0,
                           compute_dtype=jnp.float32, block_b=512):
    """Convenience one-shot API.  In real use, cache prepare_params() output."""
    prepared, meta = prepare_params(w_in, w_hidden, w_out, beta=beta,
                                    compute_dtype=compute_dtype)
    return linear_skip_nn_forward_prepared(x, prepared, meta, block_b=block_b)


def _reference_forward(x, w_in, w_hidden, w_out, beta=1.0):
    """Pure-JAX reference mirroring the PyTorch module exactly."""
    def layer(h, w):
        d_in = h.shape[1]
        d_out = w.shape[0]
        return h @ w.T + h @ (beta * jnp.eye(d_in, d_out, dtype=h.dtype))
    h = layer(x, w_in)
    for w_h in w_hidden:
        h = layer(h, w_h)
    return layer(h, w_out)


if __name__ == "__main__":
    # Model dims (small, consistent with the module's __init__ signature)
    B, d, m, k, L = 8, 16, 32, 8, 2
    beta = 0.5

    key = jax.random.PRNGKey(0)
    kx, kin, kout, *khid = jax.random.split(key, 3 + L)

    # Deterministic kaiming_normal-like init: std = sqrt(1 / fan_in)
    x = jax.random.normal(kx, (B, d), dtype=jnp.float32)
    w_in = jax.random.normal(kin, (m, d), dtype=jnp.float32) * (1.0 / d) ** 0.5
    w_hidden = [
        jax.random.normal(kh, (m, m), dtype=jnp.float32) * (1.0 / m) ** 0.5
        for kh in khid
    ]
    w_out = jax.random.normal(kout, (k, m), dtype=jnp.float32) * (1.0 / m) ** 0.5

    ref = _reference_forward(x, w_in, w_hidden, w_out, beta=beta)

    # f32 path (matches the PyTorch reference numerics).
    prepared, meta = prepare_params(w_in, w_hidden, w_out, beta=beta,
                                    compute_dtype=jnp.float32)
    out = jax.block_until_ready(
        linear_skip_nn_forward_prepared(x, prepared, meta))
    assert out.shape == (B, k), out.shape
    assert jnp.allclose(out, ref, atol=1e-4, rtol=1e-4), "f32 mismatch vs reference"

    # bf16 fast path (v6e/v7x): bf16 MXU inputs, f32 accumulation.
    prepared16, meta16 = prepare_params(w_in, w_hidden, w_out, beta=beta,
                                        compute_dtype=jnp.bfloat16)
    out16 = jax.block_until_ready(
        linear_skip_nn_forward_prepared(x, prepared16, meta16))
    assert jnp.allclose(out16, ref, atol=1e-1, rtol=1e-1), "bf16 mismatch vs reference"

    # Multi-tile / uneven-batch path (partial last block, >=2 grid steps).
    B2 = 40
    x2 = jax.random.normal(jax.random.PRNGKey(1), (B2, d), dtype=jnp.float32)
    ref2 = _reference_forward(x2, w_in, w_hidden, w_out, beta=beta)
    out2 = jax.block_until_ready(
        linear_skip_nn_forward_prepared(x2, prepared, meta, block_b=32))
    assert out2.shape == (B2, k)
    assert jnp.allclose(out2, ref2, atol=1e-4, rtol=1e-4), "multi-tile mismatch"

    print("KERNEL_OK")
</pallas_src>

<mosaic_0001>
module attributes {stable_mosaic.version = 11 : i64} {
  func.func @_fused_skip_mlp_kernel(%arg0: i32, %arg1: memref<8x16xf32, #tpu.memory_space<vmem>>, %arg2: memref<16x128xf32, #tpu.memory_space<vmem>>, %arg3: memref<2x128x128xf32, #tpu.memory_space<vmem>>, %arg4: memref<128x128xf32, #tpu.memory_space<vmem>>, %arg5: memref<8x128xf32, #tpu.memory_space<vmem>>) attributes {dimension_semantics = [#tpu.dimension_semantics<parallel>], iteration_bounds = array<i64: 1>, scalar_prefetch = 0 : i64, scratch_operands = 0 : i64, tpu.core_type = #tpu.core_type<tc>, window_params = [{transform_indices = @transform_0, window_bounds = array<i64: 8, 16>}, {pipeline_mode = #tpu.pipeline_mode<synchronous>, transform_indices = @transform_1, window_bounds = array<i64: 16, 128>}, {pipeline_mode = #tpu.pipeline_mode<synchronous>, transform_indices = @transform_2, window_bounds = array<i64: 2, 128, 128>}, {pipeline_mode = #tpu.pipeline_mode<synchronous>, transform_indices = @transform_3, window_bounds = array<i64: 128, 128>}, {transform_indices = @transform_4, window_bounds = array<i64: 8, 128>}]} {
    %c0 = arith.constant 0 : index
    %c0_0 = arith.constant 0 : index
    %0 = vector.load %arg1[%c0, %c0_0] : memref<8x16xf32, #tpu.memory_space<vmem>>, vector<8x16xf32>
    %c0_1 = arith.constant 0 : index
    %c0_2 = arith.constant 0 : index
    %1 = vector.load %arg2[%c0_1, %c0_2] : memref<16x128xf32, #tpu.memory_space<vmem>>, vector<16x128xf32>
    %cst = arith.constant dense<0.000000e+00> : vector<8x128xf32>
    %2 = tpu.matmul %0, %1, %cst {dimension_numbers = #tpu.dot_dimension_numbers<[1], [0], [0], [1], [0, 0, 1, 1], [], []>} : vector<8x16xf32>, vector<16x128xf32>, vector<8x128xf32> -> vector<8x128xf32>
    %c0_3 = arith.constant 0 : index
    %c0_4 = arith.constant 0 : index
    %c0_5 = arith.constant 0 : index
    %3 = vector.load %arg3[%c0_3, %c0_4, %c0_5] : memref<2x128x128xf32, #tpu.memory_space<vmem>>, vector<1x128x128xf32>
    %4 = vector.shape_cast %3 : vector<1x128x128xf32> to vector<128x128xf32>
    %cst_6 = arith.constant dense<0.000000e+00> : vector<8x128xf32>
    %5 = tpu.matmul %2, %4, %cst_6 {dimension_numbers = #tpu.dot_dimension_numbers<[1], [0], [0], [1], [0, 0, 1, 1], [], []>} : vector<8x128xf32>, vector<128x128xf32>, vector<8x128xf32> -> vector<8x128xf32>
    %c1 = arith.constant 1 : index
    %c0_7 = arith.constant 0 : index
    %c0_8 = arith.constant 0 : index
    %6 = vector.load %arg3[%c1, %c0_7, %c0_8] : memref<2x128x128xf32, #tpu.memory_space<vmem>>, vector<1x128x128xf32>
    %7 = vector.shape_cast %6 : vector<1x128x128xf32> to vector<128x128xf32>
    %cst_9 = arith.constant dense<0.000000e+00> : vector<8x128xf32>
    %8 = tpu.matmul %5, %7, %cst_9 {dimension_numbers = #tpu.dot_dimension_numbers<[1], [0], [0], [1], [0, 0, 1, 1], [], []>} : vector<8x128xf32>, vector<128x128xf32>, vector<8x128xf32> -> vector<8x128xf32>
    %c0_10 = arith.constant 0 : index
    %c0_11 = arith.constant 0 : index
    %9 = vector.load %arg4[%c0_10, %c0_11] : memref<128x128xf32, #tpu.memory_space<vmem>>, vector<128x128xf32>
    %cst_12 = arith.constant dense<0.000000e+00> : vector<8x128xf32>
    %10 = tpu.matmul %8, %9, %cst_12 {dimension_numbers = #tpu.dot_dimension_numbers<[1], [0], [0], [1], [0, 0, 1, 1], [], []>} : vector<8x128xf32>, vector<128x128xf32>, vector<8x128xf32> -> vector<8x128xf32>
    %c0_13 = arith.constant 0 : index
    %c0_14 = arith.constant 0 : index
    %11 = vector.load %arg5[%c0_13, %c0_14] : memref<8x128xf32, #tpu.memory_space<vmem>>, vector<8x128xf32>
    tpu.vector_store %arg5[%c0_13, %c0_14], %10 {strides = array<i32>} : memref<8x128xf32, #tpu.memory_space<vmem>>, vector<8x128xf32>,
    return
  }
  func.func @transform_0(%arg0: i32) -> (i32, i32) {
    %c0_i32 = arith.constant 0 : i32
    %c0_i32_0 = arith.constant 0 : i32
    return %arg0, %c0_i32 : i32, i32
  }
  func.func @transform_1(%arg0: i32) -> (i32, i32) {
    %c0_i32 = arith.constant 0 : i32
    %c0_i32_0 = arith.constant 0 : i32
    %c0_i32_1 = arith.constant 0 : i32
    return %c0_i32, %c0_i32_0 : i32, i32
  }
  func.func @transform_2(%arg0: i32) -> (i32, i32, i32) {
    %c0_i32 = arith.constant 0 : i32
    %c0_i32_0 = arith.constant 0 : i32
    %c0_i32_1 = arith.constant 0 : i32
    %c0_i32_2 = arith.constant 0 : i32
    return %c0_i32, %c0_i32_0, %c0_i32_1 : i32, i32, i32
  }
  func.func @transform_3(%arg0: i32) -> (i32, i32) {
    %c0_i32 = arith.constant 0 : i32
    %c0_i32_0 = arith.constant 0 : i32
    %c0_i32_1 = arith.constant 0 : i32
    return %c0_i32, %c0_i32_0 : i32, i32
  }
  func.func @transform_4(%arg0: i32) -> (i32, i32) {
    %c0_i32 = arith.constant 0 : i32
    %c0_i32_0 = arith.constant 0 : i32
    return %arg0, %c0_i32 : i32, i32
  }
}

module attributes {stable_mosaic.version = 11 : i64} {
  func.func @_fused_skip_mlp_kernel(%arg0: i32, %arg1: memref<8x16xf32, #tpu.memory_space<vmem>>, %arg2: memref<16x128xf32, #tpu.memory_space<vmem>>, %arg3: memref<2x128x128xf32, #tpu.memory_space<vmem>>, %arg4: memref<128x128xf32, #tpu.memory_space<vmem>>, %arg5: memref<8x128xf32, #tpu.memory_space<vmem>>) attributes {dimension_semantics = [#tpu.dimension_semantics<parallel>], iteration_bounds = array<i64: 1>, scalar_prefetch = 0 : i64, scratch_operands = 0 : i64, tpu.core_type = #tpu.core_type<tc>, window_params = [{transform_indices = @transform_0, window_bounds = array<i64: 8, 16>}, {pipeline_mode = #tpu.pipeline_mode<synchronous>, transform_indices = @transform_1, window_bounds = array<i64: 16, 128>}, {pipeline_mode = #tpu.pipeline_mode<synchronous>, transform_indices = @transform_2, window_bounds = array<i64: 2, 128, 128>}, {pipeline_mode = #tpu.pipeline_mode<synchronous>, transform_indices = @transform_3, window_bounds = array<i64: 128, 128>}, {transform_indices = @transform_4, window_bounds = array<i64: 8, 128>}]} {
    %c0 = arith.constant 0 : index
    %c0_0 = arith.constant 0 : index
    %0 = vector.load %arg1[%c0, %c0_0] : memref<8x16xf32, #tpu.memory_space<vmem>>, vector<8x16xf32>
    %c0_1 = arith.constant 0 : index
    %c0_2 = arith.constant 0 : index
    %1 = vector.load %arg2[%c0_1, %c0_2] : memref<16x128xf32, #tpu.memory_space<vmem>>, vector<16x128xf32>
    %cst = arith.constant dense<0.000000e+00> : vector<8x128xf32>
    %2 = tpu.matmul %0, %1, %cst {dimension_numbers = #tpu.dot_dimension_numbers<[1], [0], [0], [1], [0, 0, 1, 1], [], []>} : vector<8x16xf32>, vector<16x128xf32>, vector<8x128xf32> -> vector<8x128xf32>
    %c0_3 = arith.constant 0 : index
    %c0_4 = arith.constant 0 : index
    %c0_5 = arith.constant 0 : index
    %3 = vector.load %arg3[%c0_3, %c0_4, %c0_5] : memref<2x128x128xf32, #tpu.memory_space<vmem>>, vector<1x128x128xf32>
    %4 = vector.shape_cast %3 : vector<1x128x128xf32> to vector<128x128xf32>
    %cst_6 = arith.constant dense<0.000000e+00> : vector<8x128xf32>
    %5 = tpu.matmul %2, %4, %cst_6 {dimension_numbers = #tpu.dot_dimension_numbers<[1], [0], [0], [1], [0, 0, 1, 1], [], []>} : vector<8x128xf32>, vector<128x128xf32>, vector<8x128xf32> -> vector<8x128xf32>
    %c1 = arith.constant 1 : index
    %c0_7 = arith.constant 0 : index
    %c0_8 = arith.constant 0 : index
    %6 = vector.load %arg3[%c1, %c0_7, %c0_8] : memref<2x128x128xf32, #tpu.memory_space<vmem>>, vector<1x128x128xf32>
    %7 = vector.shape_cast %6 : vector<1x128x128xf32> to vector<128x128xf32>
    %cst_9 = arith.constant dense<0.000000e+00> : vector<8x128xf32>
    %8 = tpu.matmul %5, %7, %cst_9 {dimension_numbers = #tpu.dot_dimension_numbers<[1], [0], [0], [1], [0, 0, 1, 1], [], []>} : vector<8x128xf32>, vector<128x128xf32>, vector<8x128xf32> -> vector<8x128xf32>
    %c0_10 = arith.constant 0 : index
    %c0_11 = arith.constant 0 : index
    %9 = vector.load %arg4[%c0_10, %c0_11] : memref<128x128xf32, #tpu.memory_space<vmem>>, vector<128x128xf32>
    %cst_12 = arith.constant dense<0.000000e+00> : vector<8x128xf32>
    %10 = tpu.matmul %8, %9, %cst_12 {dimension_numbers = #tpu.dot_dimension_numbers<[1], [0], [0], [1], [0, 0, 1, 1], [], []>} : vector<8x128xf32>, vector<128x128xf32>, vector<8x128xf32> -> vector<8x128xf32>
    %c0_13 = arith.constant 0 : index
    %c0_14 = arith.constant 0 : index
    %11 = vector.load %arg5[%c0_13, %c0_14] : memref<8x128xf32, #tpu.memory_space<vmem>>, vector<8x128xf32>
    tpu.vector_store %arg5[%c0_13, %c0_14], %10 {strides = array<i32>} : memref<8x128xf32, #tpu.memory_space<vmem>>, vector<8x128xf32>,
    return
  }
  func.func @transform_0(%arg0: i32) -> (i32, i32) {
    %c0_i32 = arith.constant 0 : i32
    %c0_i32_0 = arith.constant 0 : i32
    return %arg0, %c0_i32 : i32, i32
  }
  func.func @transform_1(%arg0: i32) -> (i32, i32) {
    %c0_i32 = arith.constant 0 : i32
    %c0_i32_0 = arith.constant 0 : i32
    %c0_i32_1 = arith.constant 0 : i32
    return %c0_i32, %c0_i32_0 : i32, i32
  }
  func.func @transform_2(%arg0: i32) -> (i32, i32, i32) {
    %c0_i32 = arith.constant 0 : i32
    %c0_i32_0 = arith.constant 0 : i32
    %c0_i32_1 = arith.constant 0 : i32
    %c0_i32_2 = arith.constant 0 : i32
    return %c0_i32, %c0_i32_0, %c0_i32_1 : i32, i32, i32
  }
  func.func @transform_3(%arg0: i32) -> (i32, i32) {
    %c0_i32 = arith.constant 0 : i32
    %c0_i32_0 = arith.constant 0 : i32
    %c0_i32_1 = arith.constant 0 : i32
    return %c0_i32, %c0_i32_0 : i32, i32
  }
  func.func @transform_4(%arg0: i32) -> (i32, i32) {
    %c0_i32 = arith.constant 0 : i32
    %c0_i32_0 = arith.constant 0 : i32
    return %arg0, %c0_i32 : i32, i32
  }
}

</mosaic_0001>

<llo_original>
// kernel: tpu_custom_call.1
$region0: #{tpu_custom_call.1}
  #allocation0 [shape = 'u32[]', space=smem, size = 0x4, offset = 0x4, fixed_abs, tag = 'smem constant byte address 0x4 - core index']
  #allocation1 [shape = 'u32[144,128]{1,0:T(1,128)}', space=vmem, size = 0x12000, scoped, tag = 'internal scratch']
  %s0 = inlined_call_operand.hbm [shape: f32[8,16], index: 0, kind: input, shape index: {}]
  %s1 = inlined_call_operand.hbm [shape: f32[16,128], index: 1, kind: input, shape index: {}]
  %s2 = inlined_call_operand.hbm [shape: f32[2,128,128], index: 2, kind: input, shape index: {}]
  %s3 = inlined_call_operand.hbm [shape: f32[128,128], index: 3, kind: input, shape index: {}]
  %s4 = inlined_call_operand.hbm [shape: f32[8,128], index: 4, kind: output, shape index: {}]
  %s5 = sld [smem:[#allocation0]]
  $region42: #{tpu_custom_call.1} parent=0
    _
  %s7 = ssub.s32 1, %s5
  %s8 = scalar_select 0, %s7, %s5
  $region1: #{tpu_custom_call.1} parent=0
    #allocation2 [shape = 'u8[4096]{0}', space=vmem, size = 0x1000, scoped, tag = 'input window, operand 0, single buffered']
    #allocation3 [shape = 's32[1]{0}', space=sflag, size = 0x4, scoped, tag = 'scoped memory for tpu_custom_call.1']
    #allocation4 [shape = 's32[1]{0}', space=sflag, size = 0x4, scoped, tag = 'scoped memory for tpu_custom_call.1']
    #allocation5 [shape = 'u8[8192]{0}', space=vmem, size = 0x2000, scoped, tag = 'input window, operand 1, single buffered']
    #allocation6 [shape = 's32[1]{0}', space=sflag, size = 0x4, scoped, tag = 'scoped memory for tpu_custom_call.1']
    #allocation7 [shape = 'u8[131072]{0}', space=vmem, size = 0x20000, scoped, tag = 'input window, operand 2, single buffered']
    #allocation8 [shape = 'u8[65536]{0}', space=vmem, size = 0x10000, scoped, tag = 'input window, operand 3, single buffered']
    #allocation9 [shape = 's32[1]{0}', space=sflag, size = 0x4, scoped, tag = 'scoped memory for tpu_custom_call.1']
    #allocation10 [shape = 'u8[4096]{0}', space=vmem, size = 0x1000, scoped, tag = 'output window, operand 0, single buffered']
    %9 = vsyncpa [#allocation3], 0
    %10 = vsyncpa [#allocation6], 0
    %11 = vsyncpa [#allocation9], 0
    %12 = vsyncpa [#allocation4], 0
    // Predicated region
    $region2: #{tpu_custom_call.1} parent=1 // pred_check
      _
    $region3: #{tpu_custom_call.1} parent=1 // pred_check_branch
      %14 = sbr.rel (0) target = $region5
    $region4: #{tpu_custom_call.1} parent=1 // pred_region
      %s16 = ssub.s32 128, 128
      %17 = vsyncadd [#allocation3], %s16
      %s19 = sshll.u32 [#allocation2], 4
      %s20 = int_to_ptr.vmem [resolvable:$true] %s19
      %22 = dma.hbm_to_vmem [thread:$0]  %s0, 128, %s20, [#allocation3]
    $region5: #{tpu_custom_call.1} parent=1 // pred_fallthru
      _
    // Predicated region
    $region6: #{tpu_custom_call.1} parent=1 // pred_check
      _
    $region7: #{tpu_custom_call.1} parent=1 // pred_check_branch
      %24 = sbr.rel (0) target = $region9
    $region8: #{tpu_custom_call.1} parent=1 // pred_region
      %s26 = ssub.s32 256, 256
      %27 = vsyncadd [#allocation6], %s26
      %s28 = sshll.u32 [#allocation5], 4
      %s29 = int_to_ptr.vmem [resolvable:$true] %s28
      %34 = dma.hbm_to_vmem [thread:$0]  %s1, 256, %s29, [#allocation6], 128, 128, 8
    $region9: #{tpu_custom_call.1} parent=1 // pred_fallthru
      _
    // Predicated region
    $region10: #{tpu_custom_call.1} parent=1 // pred_check
      _
    $region11: #{tpu_custom_call.1} parent=1 // pred_check_branch
      %36 = sbr.rel (0) target = $region13
    $region12: #{tpu_custom_call.1} parent=1 // pred_region
      %s38 = ssub.s32 4096, 4096
      %39 = vsyncadd [#allocation6], %s38
      %s40 = sshll.u32 [#allocation7], 4
      %s41 = int_to_ptr.vmem [resolvable:$true] %s40
      %46 = dma.hbm_to_vmem [thread:$0]  %s2, 4096, %s41, [#allocation6], 128, 128, 8
    $region13: #{tpu_custom_call.1} parent=1 // pred_fallthru
      _
    // Predicated region
    $region14: #{tpu_custom_call.1} parent=1 // pred_check
      _
    $region15: #{tpu_custom_call.1} parent=1 // pred_check_branch
      %48 = sbr.rel (0) target = $region17
    $region16: #{tpu_custom_call.1} parent=1 // pred_region
      %s50 = ssub.s32 2048, 2048
      %51 = vsyncadd [#allocation9], %s50
      %s52 = sshll.u32 [#allocation8], 4
      %s53 = int_to_ptr.vmem [resolvable:$true] %s52
      %58 = dma.hbm_to_vmem [thread:$0]  %s3, 2048, %s53, [#allocation9], 128, 128, 8
    $region17: #{tpu_custom_call.1} parent=1 // pred_fallthru
      _
    // Predicated region
    $region18: #{tpu_custom_call.1} parent=1 // pred_check
      _
    $region19: #{tpu_custom_call.1} parent=1 // pred_check_branch
      %60 = sbr.rel (0) target = $region21
    $region20: #{tpu_custom_call.1} parent=1 // pred_region
      %61 = dma.done [#allocation3], 128
    $region21: #{tpu_custom_call.1} parent=1 // pred_fallthru
      _
    // Predicated region
    $region22: #{tpu_custom_call.1} parent=1 // pred_check
      _
    $region23: #{tpu_custom_call.1} parent=1 // pred_check_branch
      %63 = sbr.rel (0) target = $region25
    $region24: #{tpu_custom_call.1} parent=1 // pred_region
      %64 = dma.done [#allocation6], 256
    $region25: #{tpu_custom_call.1} parent=1 // pred_fallthru
      _
    // Predicated region
    $region26: #{tpu_custom_call.1} parent=1 // pred_check
      _
    $region27: #{tpu_custom_call.1} parent=1 // pred_check_branch
      %66 = sbr.rel (0) target = $region29
    $region28: #{tpu_custom_call.1} parent=1 // pred_region
      %67 = dma.done [#allocation6], 4096
    $region29: #{tpu_custom_call.1} parent=1 // pred_fallthru
      _
    // Predicated region
    $region30: #{tpu_custom_call.1} parent=1 // pred_check
      _
    $region31: #{tpu_custom_call.1} parent=1 // pred_check_branch
      %69 = sbr.rel (0) target = $region33
    $region32: #{tpu_custom_call.1} parent=1 // pred_region
      %70 = dma.done [#allocation9], 2048
    $region33: #{tpu_custom_call.1} parent=1 // pred_fallthru
      _
    %v71 = vld [vmem:[#allocation2] sm:$0xff]
    %v72 = vld [vmem:[#allocation5] sm:$0xff]
    %v73 = vld [vmem:[#allocation5 + $0x8] sm:$0xff]
    %vm74 = vcmask 130048
    %v76 = vsel %vm74, %v71, 0
    %78 = vmatprep.subr.mxu0 0.0
    %79 = vmatpush1.msra.mxu0 %v72
    %80 = vmatprep.subr.mxu0 0.0
    %81 = vmatpush1.msra.mxu0 %v73
    %82 = vmatprep.subr.mxu0 0.0
    %83 = vmatpush1.msra.mxu0 0.0
    %84 = vmatprep.subr.mxu0 0.0
    %85 = vmatpush1.msra.mxu0 0.0
    %86 = vmatprep.subr.mxu0 0.0
    %87 = vmatpush1.msra.mxu0 0.0
    %88 = vmatprep.subr.mxu0 0.0
    %89 = vmatpush1.msra.mxu0 0.0
    %90 = vmatprep.subr.mxu0 0.0
    %91 = vmatpush1.msra.mxu0 0.0
    %92 = vmatprep.subr.mxu0 0.0
    %93 = vmatpush1.msra.mxu0 0.0
    %94 = vmatprep.subr.mxu0 0.0
    %95 = vmatpush1.msra.mxu0 0.0
    %96 = vmatprep.subr.mxu0 0.0
    %97 = vmatpush1.msra.mxu0 0.0
    %98 = vmatprep.subr.mxu0 0.0
    %99 = vmatpush1.msra.mxu0 0.0
    %100 = vmatprep.subr.mxu0 0.0
    %101 = vmatpush1.msra.mxu0 0.0
    %102 = vmatprep.subr.mxu0 0.0
    %103 = vmatpush1.msra.mxu0 0.0
    %104 = vmatprep.subr.mxu0 0.0
    %105 = vmatpush1.msra.mxu0 0.0
    %106 = vmatprep.subr.mxu0 0.0
    %107 = vmatpush1.msra.mxu0 0.0
    %108 = vmatprep.subr.mxu0 0.0
    %109 = vmatpush1.msra.mxu0 0.0
    %110 = vmatprep.subr.mxu0 0.0
    %111 = vmatpush1.msra.mxu0 0.0
    %112 = vmatprep.subr.mxu0 0.0
    %113 = vmatpush1.msra.mxu0 0.0
    %114 = vmatprep.subr.mxu0 0.0
    %115 = vmatpush1.msra.mxu0 0.0
    %116 = vmatprep.subr.mxu0 0.0
    %117 = vmatpush1.msra.mxu0 0.0
    %118 = vmatprep.subr.mxu0 0.0
    %119 = vmatpush1.msra.mxu0 0.0
    %120 = vmatprep.subr.mxu0 0.0
    %121 = vmatpush1.msra.mxu0 0.0
    %122 = vmatprep.subr.mxu0 0.0
    %123 = vmatpush1.msra.mxu0 0.0
    %124 = vmatprep.subr.mxu0 0.0
    %125 = vmatpush1.msra.mxu0 0.0
    %126 = vmatprep.subr.mxu0 0.0
    %127 = vmatpush1.msra.mxu0 0.0
    %128 = vmatprep.subr.mxu0 0.0
    %129 = vmatpush1.msra.mxu0 0.0
    %130 = vmatprep.subr.mxu0 0.0
    %131 = vmatpush1.msra.mxu0 0.0
    %132 = vmatprep.subr.mxu0 0.0
    %133 = vmatpush1.msra.mxu0 0.0
    %134 = vmatprep.subr.mxu0 0.0
    %135 = vmatpush1.msra.mxu0 0.0
    %136 = vmatprep.subr.mxu0 0.0
    %137 = vmatpush1.msra.mxu0 0.0
    %138 = vmatprep.subr.mxu0 0.0
    %139 = vmatpush1.msra.mxu0 0.0
    %140 = vmatprep.subr.mxu0 0.0
    %141 = vmatpush1.msra.mxu0 0.0
    %142 = vmatprep.mubr.f32.mxu0 0.0
    %143 = vmatmul.mubr.f32.gmra.mrb[0].mxu0 %v76
    %v144 = vpop.f32.mrb[0].mxu0
    %v145 = vadd.f32 0.0, %v144
    %v146 = vpop.f32.mrb[0].mxu0
    %147 = vdwg.mxu0
    %v148 = vld [vmem:[#allocation7] sm:$0xff]
    %v149 = vld [vmem:[#allocation7 + $0x8] sm:$0xff]
    %v150 = vld [vmem:[#allocation7 + $0x10] sm:$0xff]
    %v151 = vld [vmem:[#allocation7 + $0x18] sm:$0xff]
    %v152 = vld [vmem:[#allocation7 + $0x20] sm:$0xff]
    %v153 = vld [vmem:[#allocation7 + $0x28] sm:$0xff]
    %v154 = vld [vmem:[#allocation7 + $0x30] sm:$0xff]
    %v155 = vld [vmem:[#allocation7 + $0x38] sm:$0xff]
    %v156 = vld [vmem:[#allocation7 + $0x40] sm:$0xff]
    %v157 = vld [vmem:[#allocation7 + $0x48] sm:$0xff]
    %v158 = vld [vmem:[#allocation7 + $0x50] sm:$0xff]
    %v159 = vld [vmem:[#allocation7 + $0x58] sm:$0xff]
    %v160 = vld [vmem:[#allocation7 + $0x60] sm:$0xff]
    %v161 = vld [vmem:[#allocation7 + $0x68] sm:$0xff]
    %v162 = vld [vmem:[#allocation7 + $0x70] sm:$0xff]
    %v163 = vld [vmem:[#allocation7 + $0x78] sm:$0xff]
    %164 = vmatprep.subr.mxu0 0.0
    %165 = vmatpush1.msra.mxu0 %v148
    %166 = vmatprep.subr.mxu0 0.0
    %167 = vmatpush1.msra.mxu0 %v149
    %168 = vmatprep.subr.mxu0 0.0
    %169 = vmatpush1.msra.mxu0 %v150
    %170 = vmatprep.subr.mxu0 0.0
    %171 = vmatpush1.msra.mxu0 %v151
    %172 = vmatprep.subr.mxu0 0.0
    %173 = vmatpush1.msra.mxu0 %v152
    %174 = vmatprep.subr.mxu0 0.0
    %175 = vmatpush1.msra.mxu0 %v153
    %176 = vmatprep.subr.mxu0 0.0
    %177 = vmatpush1.msra.mxu0 %v154
    %178 = vmatprep.subr.mxu0 0.0
    %179 = vmatpush1.msra.mxu0 %v155
    %180 = vmatprep.subr.mxu0 0.0
    %181 = vmatpush1.msra.mxu0 %v156
    %182 = vmatprep.subr.mxu0 0.0
    %183 = vmatpush1.msra.mxu0 %v157
    %184 = vmatprep.subr.mxu0 0.0
    %185 = vmatpush1.msra.mxu0 %v158
    %186 = vmatprep.subr.mxu0 0.0
    %187 = vmatpush1.msra.mxu0 %v159
    %188 = vmatprep.subr.mxu0 0.0
    %189 = vmatpush1.msra.mxu0 %v160
    %190 = vmatprep.subr.mxu0 0.0
    %191 = vmatpush1.msra.mxu0 %v161
    %192 = vmatprep.subr.mxu0 0.0
    %193 = vmatpush1.msra.mxu0 %v162
    %194 = vmatprep.subr.mxu0 0.0
    %195 = vmatpush1.msra.mxu0 %v163
    %196 = vmatprep.subr.mxu0 0.0
    %197 = vmatpush1.msra.mxu0 0.0
    %198 = vmatprep.subr.mxu0 0.0
    %199 = vmatpush1.msra.mxu0 0.0
    %200 = vmatprep.subr.mxu0 0.0
    %201 = vmatpush1.msra.mxu0 0.0
    %202 = vmatprep.subr.mxu0 0.0
    %203 = vmatpush1.msra.mxu0 0.0
    %204 = vmatprep.subr.mxu0 0.0
    %205 = vmatpush1.msra.mxu0 0.0
    %206 = vmatprep.subr.mxu0 0.0
    %207 = vmatpush1.msra.mxu0 0.0
    %208 = vmatprep.subr.mxu0 0.0
    %209 = vmatpush1.msra.mxu0 0.0
    %210 = vmatprep.subr.mxu0 0.0
    %211 = vmatpush1.msra.mxu0 0.0
    %212 = vmatprep.subr.mxu0 0.0
    %213 = vmatpush1.msra.mxu0 0.0
    %214 = vmatprep.subr.mxu0 0.0
    %215 = vmatpush1.msra.mxu0 0.0
    %216 = vmatprep.subr.mxu0 0.0
    %217 = vmatpush1.msra.mxu0 0.0
    %218 = vmatprep.subr.mxu0 0.0
    %219 = vmatpush1.msra.mxu0 0.0
    %220 = vmatprep.subr.mxu0 0.0
    %221 = vmatpush1.msra.mxu0 0.0
    %222 = vmatprep.subr.mxu0 0.0
    %223 = vmatpush1.msra.mxu0 0.0
    %224 = vmatprep.subr.mxu0 0.0
    %225 = vmatpush1.msra.mxu0 0.0
    %226 = vmatprep.subr.mxu0 0.0
    %227 = vmatpush1.msra.mxu0 0.0
    %228 = vmatprep.mubr.f32.mxu0 0.0
    %229 = vmatmul.mubr.f32.gmra.mrb[0].mxu0 %v145
    %v230 = vpop.f32.mrb[0].mxu0
    %v231 = vadd.f32 0.0, %v230
    %v232 = vpop.f32.mrb[0].mxu0
    %233 = vdwg.mxu0
    %s234 = scalar_lea.vmem [#allocation7], 128
    %v235 = vld [vmem:[%s234] sm:$0xff]
    %v236 = vld [vmem:[%s234 + $0x8] sm:$0xff]
    %v237 = vld [vmem:[%s234 + $0x10] sm:$0xff]
    %v238 = vld [vmem:[%s234 + $0x18] sm:$0xff]
    %v239 = vld [vmem:[%s234 + $0x20] sm:$0xff]
    %v240 = vld [vmem:[%s234 + $0x28] sm:$0xff]
    %v241 = vld [vmem:[%s234 + $0x30] sm:$0xff]
    %v242 = vld [vmem:[%s234 + $0x38] sm:$0xff]
    %v243 = vld [vmem:[%s234 + $0x40] sm:$0xff]
    %v244 = vld [vmem:[%s234 + $0x48] sm:$0xff]
    %v245 = vld [vmem:[%s234 + $0x50] sm:$0xff]
    %v246 = vld [vmem:[%s234 + $0x58] sm:$0xff]
    %v247 = vld [vmem:[%s234 + $0x60] sm:$0xff]
    %v248 = vld [vmem:[%s234 + $0x68] sm:$0xff]
    %v249 = vld [vmem:[%s234 + $0x70] sm:$0xff]
    %v250 = vld [vmem:[%s234 + $0x78] sm:$0xff]
    %251 = vmatprep.subr.mxu0 0.0
    %252 = vmatpush1.msra.mxu0 %v235
    %253 = vmatprep.subr.mxu0 0.0
    %254 = vmatpush1.msra.mxu0 %v236
    %255 = vmatprep.subr.mxu0 0.0
    %256 = vmatpush1.msra.mxu0 %v237
    %257 = vmatprep.subr.mxu0 0.0
    %258 = vmatpush1.msra.mxu0 %v238
    %259 = vmatprep.subr.mxu0 0.0
    %260 = vmatpush1.msra.mxu0 %v239
    %261 = vmatprep.subr.mxu0 0.0
    %262 = vmatpush1.msra.mxu0 %v240
    %263 = vmatprep.subr.mxu0 0.0
    %264 = vmatpush1.msra.mxu0 %v241
    %265 = vmatprep.subr.mxu0 0.0
    %266 = vmatpush1.msra.mxu0 %v242
    %267 = vmatprep.subr.mxu0 0.0
    %268 = vmatpush1.msra.mxu0 %v243
    %269 = vmatprep.subr.mxu0 0.0
    %270 = vmatpush1.msra.mxu0 %v244
    %271 = vmatprep.subr.mxu0 0.0
    %272 = vmatpush1.msra.mxu0 %v245
    %273 = vmatprep.subr.mxu0 0.0
    %274 = vmatpush1.msra.mxu0 %v246
    %275 = vmatprep.subr.mxu0 0.0
    %276 = vmatpush1.msra.mxu0 %v247
    %277 = vmatprep.subr.mxu0 0.0
    %278 = vmatpush1.msra.mxu0 %v248
    %279 = vmatprep.subr.mxu0 0.0
    %280 = vmatpush1.msra.mxu0 %v249
    %281 = vmatprep.subr.mxu0 0.0
    %282 = vmatpush1.msra.mxu0 %v250
    %283 = vmatprep.subr.mxu0 0.0
    %284 = vmatpush1.msra.mxu0 0.0
    %285 = vmatprep.subr.mxu0 0.0
    %286 = vmatpush1.msra.mxu0 0.0
    %287 = vmatprep.subr.mxu0 0.0
    %288 = vmatpush1.msra.mxu0 0.0
    %289 = vmatprep.subr.mxu0 0.0
    %290 = vmatpush1.msra.mxu0 0.0
    %291 = vmatprep.subr.mxu0 0.0
    %292 = vmatpush1.msra.mxu0 0.0
    %293 = vmatprep.subr.mxu0 0.0
    %294 = vmatpush1.msra.mxu0 0.0
    %295 = vmatprep.subr.mxu0 0.0
    %296 = vmatpush1.msra.mxu0 0.0
    %297 = vmatprep.subr.mxu0 0.0
    %298 = vmatpush1.msra.mxu0 0.0
    %299 = vmatprep.subr.mxu0 0.0
    %300 = vmatpush1.msra.mxu0 0.0
    %301 = vmatprep.subr.mxu0 0.0
    %302 = vmatpush1.msra.mxu0 0.0
    %303 = vmatprep.subr.mxu0 0.0
    %304 = vmatpush1.msra.mxu0 0.0
    %305 = vmatprep.subr.mxu0 0.0
    %306 = vmatpush1.msra.mxu0 0.0
    %307 = vmatprep.subr.mxu0 0.0
    %308 = vmatpush1.msra.mxu0 0.0
    %309 = vmatprep.subr.mxu0 0.0
    %310 = vmatpush1.msra.mxu0 0.0
    %311 = vmatprep.subr.mxu0 0.0
    %312 = vmatpush1.msra.mxu0 0.0
    %313 = vmatprep.subr.mxu0 0.0
    %314 = vmatpush1.msra.mxu0 0.0
    %315 = vmatprep.mubr.f32.mxu0 0.0
    %316 = vmatmul.mubr.f32.gmra.mrb[0].mxu0 %v231
    %v317 = vpop.f32.mrb[0].mxu0
    %v318 = vadd.f32 0.0, %v317
    %v319 = vpop.f32.mrb[0].mxu0
    %320 = vdwg.mxu0
    %v321 = vld [vmem:[#allocation8] sm:$0xff]
    %v322 = vld [vmem:[#allocation8 + $0x8] sm:$0xff]
    %v323 = vld [vmem:[#allocation8 + $0x10] sm:$0xff]
    %v324 = vld [vmem:[#allocation8 + $0x18] sm:$0xff]
    %v325 = vld [vmem:[#allocation8 + $0x20] sm:$0xff]
    %v326 = vld [vmem:[#allocation8 + $0x28] sm:$0xff]
    %v327 = vld [vmem:[#allocation8 + $0x30] sm:$0xff]
    %v328 = vld [vmem:[#allocation8 + $0x38] sm:$0xff]
    %v329 = vld [vmem:[#allocation8 + $0x40] sm:$0xff]
    %v330 = vld [vmem:[#allocation8 + $0x48] sm:$0xff]
    %v331 = vld [vmem:[#allocation8 + $0x50] sm:$0xff]
    %v332 = vld [vmem:[#allocation8 + $0x58] sm:$0xff]
    %v333 = vld [vmem:[#allocation8 + $0x60] sm:$0xff]
    %v334 = vld [vmem:[#allocation8 + $0x68] sm:$0xff]
    %v335 = vld [vmem:[#allocation8 + $0x70] sm:$0xff]
    %v336 = vld [vmem:[#allocation8 + $0x78] sm:$0xff]
    %337 = vmatprep.subr.mxu0 0.0
    %338 = vmatpush1.msra.mxu0 %v321
    %339 = vmatprep.subr.mxu0 0.0
    %340 = vmatpush1.msra.mxu0 %v322
    %341 = vmatprep.subr.mxu0 0.0
    %342 = vmatpush1.msra.mxu0 %v323
    %343 = vmatprep.subr.mxu0 0.0
    %344 = vmatpush1.msra.mxu0 %v324
    %345 = vmatprep.subr.mxu0 0.0
    %346 = vmatpush1.msra.mxu0 %v325
    %347 = vmatprep.subr.mxu0 0.0
    %348 = vmatpush1.msra.mxu0 %v326
    %349 = vmatprep.subr.mxu0 0.0
    %350 = vmatpush1.msra.mxu0 %v327
    %351 = vmatprep.subr.mxu0 0.0
    %352 = vmatpush1.msra.mxu0 %v328
    %353 = vmatprep.subr.mxu0 0.0
    %354 = vmatpush1.msra.mxu0 %v329
    %355 = vmatprep.subr.mxu0 0.0
    %356 = vmatpush1.msra.mxu0 %v330
    %357 = vmatprep.subr.mxu0 0.0
    %358 = vmatpush1.msra.mxu0 %v331
    %359 = vmatprep.subr.mxu0 0.0
    %360 = vmatpush1.msra.mxu0 %v332
    %361 = vmatprep.subr.mxu0 0.0
    %362 = vmatpush1.msra.mxu0 %v333
    %363 = vmatprep.subr.mxu0 0.0
    %364 = vmatpush1.msra.mxu0 %v334
    %365 = vmatprep.subr.mxu0 0.0
    %366 = vmatpush1.msra.mxu0 %v335
    %367 = vmatprep.subr.mxu0 0.0
    %368 = vmatpush1.msra.mxu0 %v336
    %369 = vmatprep.subr.mxu0 0.0
    %370 = vmatpush1.msra.mxu0 0.0
    %371 = vmatprep.subr.mxu0 0.0
    %372 = vmatpush1.msra.mxu0 0.0
    %373 = vmatprep.subr.mxu0 0.0
    %374 = vmatpush1.msra.mxu0 0.0
    %375 = vmatprep.subr.mxu0 0.0
    %376 = vmatpush1.msra.mxu0 0.0
    %377 = vmatprep.subr.mxu0 0.0
    %378 = vmatpush1.msra.mxu0 0.0
    %379 = vmatprep.subr.mxu0 0.0
    %380 = vmatpush1.msra.mxu0 0.0
    %381 = vmatprep.subr.mxu0 0.0
    %382 = vmatpush1.msra.mxu0 0.0
    %383 = vmatprep.subr.mxu0 0.0
    %384 = vmatpush1.msra.mxu0 0.0
    %385 = vmatprep.subr.mxu0 0.0
    %386 = vmatpush1.msra.mxu0 0.0
    %387 = vmatprep.subr.mxu0 0.0
    %388 = vmatpush1.msra.mxu0 0.0
    %389 = vmatprep.subr.mxu0 0.0
    %390 = vmatpush1.msra.mxu0 0.0
    %391 = vmatprep.subr.mxu0 0.0
    %392 = vmatpush1.msra.mxu0 0.0
    %393 = vmatprep.subr.mxu0 0.0
    %394 = vmatpush1.msra.mxu0 0.0
    %395 = vmatprep.subr.mxu0 0.0
    %396 = vmatpush1.msra.mxu0 0.0
    %397 = vmatprep.subr.mxu0 0.0
    %398 = vmatpush1.msra.mxu0 0.0
    %399 = vmatprep.subr.mxu0 0.0
    %400 = vmatpush1.msra.mxu0 0.0
    %401 = vmatprep.mubr.f32.mxu0 0.0
    %402 = vmatmul.mubr.f32.gmra.mrb[0].mxu0 %v318
    %v403 = vpop.f32.mrb[0].mxu0
    %v404 = vadd.f32 0.0, %v403
    %v405 = vpop.f32.mrb[0].mxu0
    %406 = vdwg.mxu0
    %407 = vst [vmem:[#allocation10] sm:$0xff] %v404
    // Predicated region
    $region34: #{tpu_custom_call.1} parent=1 // pred_check
      _
    $region35: #{tpu_custom_call.1} parent=1 // pred_check_branch
      %409 = sbr.rel (0) target = $region37
    $region36: #{tpu_custom_call.1} parent=1 // pred_region
      %s411 = ssub.s32 128, 128
      %412 = vsyncadd [#allocation4], %s411
      %s414 = sshll.u32 [#allocation10], 4
      %s415 = int_to_ptr.vmem [resolvable:$true] %s414
      %417 = dma.vmem_to_hbm [thread:$0]  %s415, 128, %s4, [#allocation4]
    $region37: #{tpu_custom_call.1} parent=1 // pred_fallthru
      _
    // Predicated region
    $region38: #{tpu_custom_call.1} parent=1 // pred_check
      _
    $region39: #{tpu_custom_call.1} parent=1 // pred_check_branch
      %419 = sbr.rel (0) target = $region41
    $region40: #{tpu_custom_call.1} parent=1 // pred_region
      %420 = dma.done [#allocation4], 128
    $region41: #{tpu_custom_call.1} parent=1 // pred_fallthru
      _
    %421 = vsyncpa [#allocation3], 1
    %422 = vsyncpa [#allocation6], 1
    %423 = vsyncpa [#allocation9], 1
    %424 = vsyncpa [#allocation4], 1

// kernel: tpu_custom_call.1
$region0: #{tpu_custom_call.1}
  #allocation0 [shape = 'u32[]', space=smem, size = 0x4, offset = 0x4, fixed_abs, tag = 'smem constant byte address 0x4 - core index']
  #allocation1 [shape = 'u32[144,128]{1,0:T(1,128)}', space=vmem, size = 0x12000, scoped, tag = 'internal scratch']
  %s0 = inlined_call_operand.hbm [shape: f32[8,16], index: 0, kind: input, shape index: {}]
  %s1 = inlined_call_operand.hbm [shape: f32[16,128], index: 1, kind: input, shape index: {}]
  %s2 = inlined_call_operand.hbm [shape: f32[2,128,128], index: 2, kind: input, shape index: {}]
  %s3 = inlined_call_operand.hbm [shape: f32[128,128], index: 3, kind: input, shape index: {}]
  %s4 = inlined_call_operand.hbm [shape: f32[8,128], index: 4, kind: output, shape index: {}]
  %s5 = sld [smem:[#allocation0]]
  $region42: #{tpu_custom_call.1} parent=0
    _
  %s7 = ssub.s32 1, %s5
  %s8 = scalar_select 0, %s7, %s5
  $region1: #{tpu_custom_call.1} parent=0
    #allocation2 [shape = 'u8[4096]{0}', space=vmem, size = 0x1000, scoped, tag = 'input window, operand 0, single buffered']
    #allocation3 [shape = 's32[1]{0}', space=sflag, size = 0x4, scoped, tag = 'scoped memory for tpu_custom_call.1']
    #allocation4 [shape = 's32[1]{0}', space=sflag, size = 0x4, scoped, tag = 'scoped memory for tpu_custom_call.1']
    #allocation5 [shape = 'u8[8192]{0}', space=vmem, size = 0x2000, scoped, tag = 'input window, operand 1, single buffered']
    #allocation6 [shape = 's32[1]{0}', space=sflag, size = 0x4, scoped, tag = 'scoped memory for tpu_custom_call.1']
    #allocation7 [shape = 'u8[131072]{0}', space=vmem, size = 0x20000, scoped, tag = 'input window, operand 2, single buffered']
    #allocation8 [shape = 'u8[65536]{0}', space=vmem, size = 0x10000, scoped, tag = 'input window, operand 3, single buffered']
    #allocation9 [shape = 's32[1]{0}', space=sflag, size = 0x4, scoped, tag = 'scoped memory for tpu_custom_call.1']
    #allocation10 [shape = 'u8[4096]{0}', space=vmem, size = 0x1000, scoped, tag = 'output window, operand 0, single buffered']
    %9 = vsyncpa [#allocation3], 0
    %10 = vsyncpa [#allocation6], 0
    %11 = vsyncpa [#allocation9], 0
    %12 = vsyncpa [#allocation4], 0
    // Predicated region
    $region2: #{tpu_custom_call.1} parent=1 // pred_check
      _
    $region3: #{tpu_custom_call.1} parent=1 // pred_check_branch
      %14 = sbr.rel (0) target = $region5
    $region4: #{tpu_custom_call.1} parent=1 // pred_region
      %s16 = ssub.s32 128, 128
      %17 = vsyncadd [#allocation3], %s16
      %s19 = sshll.u32 [#allocation2], 4
      %s20 = int_to_ptr.vmem [resolvable:$true] %s19
      %22 = dma.hbm_to_vmem [thread:$0]  %s0, 128, %s20, [#allocation3]
    $region5: #{tpu_custom_call.1} parent=1 // pred_fallthru
      _
    // Predicated region
    $region6: #{tpu_custom_call.1} parent=1 // pred_check
      _
    $region7: #{tpu_custom_call.1} parent=1 // pred_check_branch
      %24 = sbr.rel (0) target = $region9
    $region8: #{tpu_custom_call.1} parent=1 // pred_region
      %s26 = ssub.s32 256, 256
      %27 = vsyncadd [#allocation6], %s26
      %s28 = sshll.u32 [#allocation5], 4
      %s29 = int_to_ptr.vmem [resolvable:$true] %s28
      %34 = dma.hbm_to_vmem [thread:$0]  %s1, 256, %s29, [#allocation6], 128, 128, 8
    $region9: #{tpu_custom_call.1} parent=1 // pred_fallthru
      _
    // Predicated region
    $region10: #{tpu_custom_call.1} parent=1 // pred_check
      _
    $region11: #{tpu_custom_call.1} parent=1 // pred_check_branch
      %36 = sbr.rel (0) target = $region13
    $region12: #{tpu_custom_call.1} parent=1 // pred_region
      %s38 = ssub.s32 4096, 4096
      %39 = vsyncadd [#allocation6], %s38
      %s40 = sshll.u32 [#allocation7], 4
      %s41 = int_to_ptr.vmem [resolvable:$true] %s40
      %46 = dma.hbm_to_vmem [thread:$0]  %s2, 4096, %s41, [#allocation6], 128, 128, 8
    $region13: #{tpu_custom_call.1} parent=1 // pred_fallthru
      _
    // Predicated region
    $region14: #{tpu_custom_call.1} parent=1 // pred_check
      _
    $region15: #{tpu_custom_call.1} parent=1 // pred_check_branch
      %48 = sbr.rel (0) target = $region17
    $region16: #{tpu_custom_call.1} parent=1 // pred_region
      %s50 = ssub.s32 2048, 2048
      %51 = vsyncadd [#allocation9], %s50
      %s52 = sshll.u32 [#allocation8], 4
      %s53 = int_to_ptr.vmem [resolvable:$true] %s52
      %58 = dma.hbm_to_vmem [thread:$0]  %s3, 2048, %s53, [#allocation9], 128, 128, 8
    $region17: #{tpu_custom_call.1} parent=1 // pred_fallthru
      _
    // Predicated region
    $region18: #{tpu_custom_call.1} parent=1 // pred_check
      _
    $region19: #{tpu_custom_call.1} parent=1 // pred_check_branch
      %60 = sbr.rel (0) target = $region21
    $region20: #{tpu_custom_call.1} parent=1 // pred_region
      %61 = dma.done [#allocation3], 128
    $region21: #{tpu_custom_call.1} parent=1 // pred_fallthru
      _
    // Predicated region
    $region22: #{tpu_custom_call.1} parent=1 // pred_check
      _
    $region23: #{tpu_custom_call.1} parent=1 // pred_check_branch
      %63 = sbr.rel (0) target = $region25
    $region24: #{tpu_custom_call.1} parent=1 // pred_region
      %64 = dma.done [#allocation6], 256
    $region25: #{tpu_custom_call.1} parent=1 // pred_fallthru
      _
    // Predicated region
    $region26: #{tpu_custom_call.1} parent=1 // pred_check
      _
    $region27: #{tpu_custom_call.1} parent=1 // pred_check_branch
      %66 = sbr.rel (0) target = $region29
    $region28: #{tpu_custom_call.1} parent=1 // pred_region
      %67 = dma.done [#allocation6], 4096
    $region29: #{tpu_custom_call.1} parent=1 // pred_fallthru
      _
    // Predicated region
    $region30: #{tpu_custom_call.1} parent=1 // pred_check
      _
    $region31: #{tpu_custom_call.1} parent=1 // pred_check_branch
      %69 = sbr.rel (0) target = $region33
    $region32: #{tpu_custom_call.1} parent=1 // pred_region
      %70 = dma.done [#allocation9], 2048
    $region33: #{tpu_custom_call.1} parent=1 // pred_fallthru
      _
    %v71 = vld [vmem:[#allocation2] sm:$0xff]
    %v72 = vld [vmem:[#allocation5] sm:$0xff]
    %v73 = vld [vmem:[#allocation5 + $0x8] sm:$0xff]
    %vm74 = vcmask 130048
    %v76 = vsel %vm74, %v71, 0
    %78 = vmatprep.subr.mxu0 0.0
    %79 = vmatpush1.msra.mxu0 %v72
    %80 = vmatprep.subr.mxu0 0.0
    %81 = vmatpush1.msra.mxu0 %v73
    %82 = vmatprep.subr.mxu0 0.0
    %83 = vmatpush1.msra.mxu0 0.0
    %84 = vmatprep.subr.mxu0 0.0
    %85 = vmatpush1.msra.mxu0 0.0
    %86 = vmatprep.subr.mxu0 0.0
    %87 = vmatpush1.msra.mxu0 0.0
    %88 = vmatprep.subr.mxu0 0.0
    %89 = vmatpush1.msra.mxu0 0.0
    %90 = vmatprep.subr.mxu0 0.0
    %91 = vmatpush1.msra.mxu0 0.0
    %92 = vmatprep.subr.mxu0 0.0
    %93 = vmatpush1.msra.mxu0 0.0
    %94 = vmatprep.subr.mxu0 0.0
    %95 = vmatpush1.msra.mxu0 0.0
    %96 = vmatprep.subr.mxu0 0.0
    %97 = vmatpush1.msra.mxu0 0.0
    %98 = vmatprep.subr.mxu0 0.0
    %99 = vmatpush1.msra.mxu0 0.0
    %100 = vmatprep.subr.mxu0 0.0
    %101 = vmatpush1.msra.mxu0 0.0
    %102 = vmatprep.subr.mxu0 0.0
    %103 = vmatpush1.msra.mxu0 0.0
    %104 = vmatprep.subr.mxu0 0.0
    %105 = vmatpush1.msra.mxu0 0.0
    %106 = vmatprep.subr.mxu0 0.0
    %107 = vmatpush1.msra.mxu0 0.0
    %108 = vmatprep.subr.mxu0 0.0
    %109 = vmatpush1.msra.mxu0 0.0
    %110 = vmatprep.subr.mxu0 0.0
    %111 = vmatpush1.msra.mxu0 0.0
    %112 = vmatprep.subr.mxu0 0.0
    %113 = vmatpush1.msra.mxu0 0.0
    %114 = vmatprep.subr.mxu0 0.0
    %115 = vmatpush1.msra.mxu0 0.0
    %116 = vmatprep.subr.mxu0 0.0
    %117 = vmatpush1.msra.mxu0 0.0
    %118 = vmatprep.subr.mxu0 0.0
    %119 = vmatpush1.msra.mxu0 0.0
    %120 = vmatprep.subr.mxu0 0.0
    %121 = vmatpush1.msra.mxu0 0.0
    %122 = vmatprep.subr.mxu0 0.0
    %123 = vmatpush1.msra.mxu0 0.0
    %124 = vmatprep.subr.mxu0 0.0
    %125 = vmatpush1.msra.mxu0 0.0
    %126 = vmatprep.subr.mxu0 0.0
    %127 = vmatpush1.msra.mxu0 0.0
    %128 = vmatprep.subr.mxu0 0.0
    %129 = vmatpush1.msra.mxu0 0.0
    %130 = vmatprep.subr.mxu0 0.0
    %131 = vmatpush1.msra.mxu0 0.0
    %132 = vmatprep.subr.mxu0 0.0
    %133 = vmatpush1.msra.mxu0 0.0
    %134 = vmatprep.subr.mxu0 0.0
    %135 = vmatpush1.msra.mxu0 0.0
    %136 = vmatprep.subr.mxu0 0.0
    %137 = vmatpush1.msra.mxu0 0.0
    %138 = vmatprep.subr.mxu0 0.0
    %139 = vmatpush1.msra.mxu0 0.0
    %140 = vmatprep.subr.mxu0 0.0
    %141 = vmatpush1.msra.mxu0 0.0
    %142 = vmatprep.mubr.f32.mxu0 0.0
    %143 = vmatmul.mubr.f32.gmra.mrb[0].mxu0 %v76
    %v144 = vpop.f32.mrb[0].mxu0
    %v145 = vadd.f32 0.0, %v144
    %v146 = vpop.f32.mrb[0].mxu0
    %147 = vdwg.mxu0
    %v148 = vld [vmem:[#allocation7] sm:$0xff]
    %v149 = vld [vmem:[#allocation7 + $0x8] sm:$0xff]
    %v150 = vld [vmem:[#allocation7 + $0x10] sm:$0xff]
    %v151 = vld [vmem:[#allocation7 + $0x18] sm:$0xff]
    %v152 = vld [vmem:[#allocation7 + $0x20] sm:$0xff]
    %v153 = vld [vmem:[#allocation7 + $0x28] sm:$0xff]
    %v154 = vld [vmem:[#allocation7 + $0x30] sm:$0xff]
    %v155 = vld [vmem:[#allocation7 + $0x38] sm:$0xff]
    %v156 = vld [vmem:[#allocation7 + $0x40] sm:$0xff]
    %v157 = vld [vmem:[#allocation7 + $0x48] sm:$0xff]
    %v158 = vld [vmem:[#allocation7 + $0x50] sm:$0xff]
    %v159 = vld [vmem:[#allocation7 + $0x58] sm:$0xff]
    %v160 = vld [vmem:[#allocation7 + $0x60] sm:$0xff]
    %v161 = vld [vmem:[#allocation7 + $0x68] sm:$0xff]
    %v162 = vld [vmem:[#allocation7 + $0x70] sm:$0xff]
    %v163 = vld [vmem:[#allocation7 + $0x78] sm:$0xff]
    %164 = vmatprep.subr.mxu0 0.0
    %165 = vmatpush1.msra.mxu0 %v148
    %166 = vmatprep.subr.mxu0 0.0
    %167 = vmatpush1.msra.mxu0 %v149
    %168 = vmatprep.subr.mxu0 0.0
    %169 = vmatpush1.msra.mxu0 %v150
    %170 = vmatprep.subr.mxu0 0.0
    %171 = vmatpush1.msra.mxu0 %v151
    %172 = vmatprep.subr.mxu0 0.0
    %173 = vmatpush1.msra.mxu0 %v152
    %174 = vmatprep.subr.mxu0 0.0
    %175 = vmatpush1.msra.mxu0 %v153
    %176 = vmatprep.subr.mxu0 0.0
    %177 = vmatpush1.msra.mxu0 %v154
    %178 = vmatprep.subr.mxu0 0.0
    %179 = vmatpush1.msra.mxu0 %v155
    %180 = vmatprep.subr.mxu0 0.0
    %181 = vmatpush1.msra.mxu0 %v156
    %182 = vmatprep.subr.mxu0 0.0
    %183 = vmatpush1.msra.mxu0 %v157
    %184 = vmatprep.subr.mxu0 0.0
    %185 = vmatpush1.msra.mxu0 %v158
    %186 = vmatprep.subr.mxu0 0.0
    %187 = vmatpush1.msra.mxu0 %v159
    %188 = vmatprep.subr.mxu0 0.0
    %189 = vmatpush1.msra.mxu0 %v160
    %190 = vmatprep.subr.mxu0 0.0
    %191 = vmatpush1.msra.mxu0 %v161
    %192 = vmatprep.subr.mxu0 0.0
    %193 = vmatpush1.msra.mxu0 %v162
    %194 = vmatprep.subr.mxu0 0.0
    %195 = vmatpush1.msra.mxu0 %v163
    %196 = vmatprep.subr.mxu0 0.0
    %197 = vmatpush1.msra.mxu0 0.0
    %198 = vmatprep.subr.mxu0 0.0
    %199 = vmatpush1.msra.mxu0 0.0
    %200 = vmatprep.subr.mxu0 0.0
    %201 = vmatpush1.msra.mxu0 0.0
    %202 = vmatprep.subr.mxu0 0.0
    %203 = vmatpush1.msra.mxu0 0.0
    %204 = vmatprep.subr.mxu0 0.0
    %205 = vmatpush1.msra.mxu0 0.0
    %206 = vmatprep.subr.mxu0 0.0
    %207 = vmatpush1.msra.mxu0 0.0
    %208 = vmatprep.subr.mxu0 0.0
    %209 = vmatpush1.msra.mxu0 0.0
    %210 = vmatprep.subr.mxu0 0.0
    %211 = vmatpush1.msra.mxu0 0.0
    %212 = vmatprep.subr.mxu0 0.0
    %213 = vmatpush1.msra.mxu0 0.0
    %214 = vmatprep.subr.mxu0 0.0
    %215 = vmatpush1.msra.mxu0 0.0
    %216 = vmatprep.subr.mxu0 0.0
    %217 = vmatpush1.msra.mxu0 0.0
    %218 = vmatprep.subr.mxu0 0.0
    %219 = vmatpush1.msra.mxu0 0.0
    %220 = vmatprep.subr.mxu0 0.0
    %221 = vmatpush1.msra.mxu0 0.0
    %222 = vmatprep.subr.mxu0 0.0
    %223 = vmatpush1.msra.mxu0 0.0
    %224 = vmatprep.subr.mxu0 0.0
    %225 = vmatpush1.msra.mxu0 0.0
    %226 = vmatprep.subr.mxu0 0.0
    %227 = vmatpush1.msra.mxu0 0.0
    %228 = vmatprep.mubr.f32.mxu0 0.0
    %229 = vmatmul.mubr.f32.gmra.mrb[0].mxu0 %v145
    %v230 = vpop.f32.mrb[0].mxu0
    %v231 = vadd.f32 0.0, %v230
    %v232 = vpop.f32.mrb[0].mxu0
    %233 = vdwg.mxu0
    %s234 = scalar_lea.vmem [#allocation7], 128
    %v235 = vld [vmem:[%s234] sm:$0xff]
    %v236 = vld [vmem:[%s234 + $0x8] sm:$0xff]
    %v237 = vld [vmem:[%s234 + $0x10] sm:$0xff]
    %v238 = vld [vmem:[%s234 + $0x18] sm:$0xff]
    %v239 = vld [vmem:[%s234 + $0x20] sm:$0xff]
    %v240 = vld [vmem:[%s234 + $0x28] sm:$0xff]
    %v241 = vld [vmem:[%s234 + $0x30] sm:$0xff]
    %v242 = vld [vmem:[%s234 + $0x38] sm:$0xff]
    %v243 = vld [vmem:[%s234 + $0x40] sm:$0xff]
    %v244 = vld [vmem:[%s234 + $0x48] sm:$0xff]
    %v245 = vld [vmem:[%s234 + $0x50] sm:$0xff]
    %v246 = vld [vmem:[%s234 + $0x58] sm:$0xff]
    %v247 = vld [vmem:[%s234 + $0x60] sm:$0xff]
    %v248 = vld [vmem:[%s234 + $0x68] sm:$0xff]
    %v249 = vld [vmem:[%s234 + $0x70] sm:$0xff]
    %v250 = vld [vmem:[%s234 + $0x78] sm:$0xff]
    %251 = vmatprep.subr.mxu0 0.0
    %252 = vmatpush1.msra.mxu0 %v235
    %253 = vmatprep.subr.mxu0 0.0
    %254 = vmatpush1.msra.mxu0 %v236
    %255 = vmatprep.subr.mxu0 0.0
    %256 = vmatpush1.msra.mxu0 %v237
    %257 = vmatprep.subr.mxu0 0.0
    %258 = vmatpush1.msra.mxu0 %v238
    %259 = vmatprep.subr.mxu0 0.0
    %260 = vmatpush1.msra.mxu0 %v239
    %261 = vmatprep.subr.mxu0 0.0
    %262 = vmatpush1.msra.mxu0 %v240
    %263 = vmatprep.subr.mxu0 0.0
    %264 = vmatpush1.msra.mxu0 %v241
    %265 = vmatprep.subr.mxu0 0.0
    %266 = vmatpush1.msra.mxu0 %v242
    %267 = vmatprep.subr.mxu0 0.0
    %268 = vmatpush1.msra.mxu0 %v243
    %269 = vmatprep.subr.mxu0 0.0
    %270 = vmatpush1.msra.mxu0 %v244
    %271 = vmatprep.subr.mxu0 0.0
    %272 = vmatpush1.msra.mxu0 %v245
    %273 = vmatprep.subr.mxu0 0.0
    %274 = vmatpush1.msra.mxu0 %v246
    %275 = vmatprep.subr.mxu0 0.0
    %276 = vmatpush1.msra.mxu0 %v247
    %277 = vmatprep.subr.mxu0 0.0
    %278 = vmatpush1.msra.mxu0 %v248
    %279 = vmatprep.subr.mxu0 0.0
    %280 = vmatpush1.msra.mxu0 %v249
    %281 = vmatprep.subr.mxu0 0.0
    %282 = vmatpush1.msra.mxu0 %v250
    %283 = vmatprep.subr.mxu0 0.0
    %284 = vmatpush1.msra.mxu0 0.0
    %285 = vmatprep.subr.mxu0 0.0
    %286 = vmatpush1.msra.mxu0 0.0
    %287 = vmatprep.subr.mxu0 0.0
    %288 = vmatpush1.msra.mxu0 0.0
    %289 = vmatprep.subr.mxu0 0.0
    %290 = vmatpush1.msra.mxu0 0.0
    %291 = vmatprep.subr.mxu0 0.0
    %292 = vmatpush1.msra.mxu0 0.0
    %293 = vmatprep.subr.mxu0 0.0
    %294 = vmatpush1.msra.mxu0 0.0
    %295 = vmatprep.subr.mxu0 0.0
    %296 = vmatpush1.msra.mxu0 0.0
    %297 = vmatprep.subr.mxu0 0.0
    %298 = vmatpush1.msra.mxu0 0.0
    %299 = vmatprep.subr.mxu0 0.0
    %300 = vmatpush1.msra.mxu0 0.0
    %301 = vmatprep.subr.mxu0 0.0
    %302 = vmatpush1.msra.mxu0 0.0
    %303 = vmatprep.subr.mxu0 0.0
    %304 = vmatpush1.msra.mxu0 0.0
    %305 = vmatprep.subr.mxu0 0.0
    %306 = vmatpush1.msra.mxu0 0.0
    %307 = vmatprep.subr.mxu0 0.0
    %308 = vmatpush1.msra.mxu0 0.0
    %309 = vmatprep.subr.mxu0 0.0
    %310 = vmatpush1.msra.mxu0 0.0
    %311 = vmatprep.subr.mxu0 0.0
    %312 = vmatpush1.msra.mxu0 0.0
    %313 = vmatprep.subr.mxu0 0.0
    %314 = vmatpush1.msra.mxu0 0.0
    %315 = vmatprep.mubr.f32.mxu0 0.0
    %316 = vmatmul.mubr.f32.gmra.mrb[0].mxu0 %v231
    %v317 = vpop.f32.mrb[0].mxu0
    %v318 = vadd.f32 0.0, %v317
    %v319 = vpop.f32.mrb[0].mxu0
    %320 = vdwg.mxu0
    %v321 = vld [vmem:[#allocation8] sm:$0xff]
    %v322 = vld [vmem:[#allocation8 + $0x8] sm:$0xff]
    %v323 = vld [vmem:[#allocation8 + $0x10] sm:$0xff]
    %v324 = vld [vmem:[#allocation8 + $0x18] sm:$0xff]
    %v325 = vld [vmem:[#allocation8 + $0x20] sm:$0xff]
    %v326 = vld [vmem:[#allocation8 + $0x28] sm:$0xff]
    %v327 = vld [vmem:[#allocation8 + $0x30] sm:$0xff]
    %v328 = vld [vmem:[#allocation8 + $0x38] sm:$0xff]
    %v329 = vld [vmem:[#allocation8 + $0x40] sm:$0xff]
    %v330 = vld [vmem:[#allocation8 + $0x48] sm:$0xff]
    %v331 = vld [vmem:[#allocation8 + $0x50] sm:$0xff]
    %v332 = vld [vmem:[#allocation8 + $0x58] sm:$0xff]
    %v333 = vld [vmem:[#allocation8 + $0x60] sm:$0xff]
    %v334 = vld [vmem:[#allocation8 + $0x68] sm:$0xff]
    %v335 = vld [vmem:[#allocation8 + $0x70] sm:$0xff]
    %v336 = vld [vmem:[#allocation8 + $0x78] sm:$0xff]
    %337 = vmatprep.subr.mxu0 0.0
    %338 = vmatpush1.msra.mxu0 %v321
    %339 = vmatprep.subr.mxu0 0.0
    %340 = vmatpush1.msra.mxu0 %v322
    %341 = vmatprep.subr.mxu0 0.0
    %342 = vmatpush1.msra.mxu0 %v323
    %343 = vmatprep.subr.mxu0 0.0
    %344 = vmatpush1.msra.mxu0 %v324
    %345 = vmatprep.subr.mxu0 0.0
    %346 = vmatpush1.msra.mxu0 %v325
    %347 = vmatprep.subr.mxu0 0.0
    %348 = vmatpush1.msra.mxu0 %v326
    %349 = vmatprep.subr.mxu0 0.0
    %350 = vmatpush1.msra.mxu0 %v327
    %351 = vmatprep.subr.mxu0 0.0
    %352 = vmatpush1.msra.mxu0 %v328
    %353 = vmatprep.subr.mxu0 0.0
    %354 = vmatpush1.msra.mxu0 %v329
    %355 = vmatprep.subr.mxu0 0.0
    %356 = vmatpush1.msra.mxu0 %v330
    %357 = vmatprep.subr.mxu0 0.0
    %358 = vmatpush1.msra.mxu0 %v331
    %359 = vmatprep.subr.mxu0 0.0
    %360 = vmatpush1.msra.mxu0 %v332
    %361 = vmatprep.subr.mxu0 0.0
    %362 = vmatpush1.msra.mxu0 %v333
    %363 = vmatprep.subr.mxu0 0.0
    %364 = vmatpush1.msra.mxu0 %v334
    %365 = vmatprep.subr.mxu0 0.0
    %366 = vmatpush1.msra.mxu0 %v335
    %367 = vmatprep.subr.mxu0 0.0
    %368 = vmatpush1.msra.mxu0 %v336
    %369 = vmatprep.subr.mxu0 0.0
    %370 = vmatpush1.msra.mxu0 0.0
    %371 = vmatprep.subr.mxu0 0.0
    %372 = vmatpush1.msra.mxu0 0.0
    %373 = vmatprep.subr.mxu0 0.0
    %374 = vmatpush1.msra.mxu0 0.0
    %375 = vmatprep.subr.mxu0 0.0
    %376 = vmatpush1.msra.mxu0 0.0
    %377 = vmatprep.subr.mxu0 0.0
    %378 = vmatpush1.msra.mxu0 0.0
    %379 = vmatprep.subr.mxu0 0.0
    %380 = vmatpush1.msra.mxu0 0.0
    %381 = vmatprep.subr.mxu0 0.0
    %382 = vmatpush1.msra.mxu0 0.0
    %383 = vmatprep.subr.mxu0 0.0
    %384 = vmatpush1.msra.mxu0 0.0
    %385 = vmatprep.subr.mxu0 0.0
    %386 = vmatpush1.msra.mxu0 0.0
    %387 = vmatprep.subr.mxu0 0.0
    %388 = vmatpush1.msra.mxu0 0.0
    %389 = vmatprep.subr.mxu0 0.0
    %390 = vmatpush1.msra.mxu0 0.0
    %391 = vmatprep.subr.mxu0 0.0
    %392 = vmatpush1.msra.mxu0 0.0
    %393 = vmatprep.subr.mxu0 0.0
    %394 = vmatpush1.msra.mxu0 0.0
    %395 = vmatprep.subr.mxu0 0.0
    %396 = vmatpush1.msra.mxu0 0.0
    %397 = vmatprep.subr.mxu0 0.0
    %398 = vmatpush1.msra.mxu0 0.0
    %399 = vmatprep.subr.mxu0 0.0
    %400 = vmatpush1.msra.mxu0 0.0
    %401 = vmatprep.mubr.f32.mxu0 0.0
    %402 = vmatmul.mubr.f32.gmra.mrb[0].mxu0 %v318
    %v403 = vpop.f32.mrb[0].mxu0
    %v404 = vadd.f32 0.0, %v403
    %v405 = vpop.f32.mrb[0].mxu0
    %406 = vdwg.mxu0
    %407 = vst [vmem:[#allocation10] sm:$0xff] %v404
    // Predicated region
    $region34: #{tpu_custom_call.1} parent=1 // pred_check
      _
    $region35: #{tpu_custom_call.1} parent=1 // pred_check_branch
      %409 = sbr.rel (0) target = $region37
    $region36: #{tpu_custom_call.1} parent=1 // pred_region
      %s411 = ssub.s32 128, 128
      %412 = vsyncadd [#allocation4], %s411
      %s414 = sshll.u32 [#allocation10], 4
      %s415 = int_to_ptr.vmem [resolvable:$true] %s414
      %417 = dma.vmem_to_hbm [thread:$0]  %s415, 128, %s4, [#allocation4]
    $region37: #{tpu_custom_call.1} parent=1 // pred_fallthru
      _
    // Predicated region
    $region38: #{tpu_custom_call.1} parent=1 // pred_check
      _
    $region39: #{tpu_custom_call.1} parent=1 // pred_check_branch
      %419 = sbr.rel (0) target = $region41
    $region40: #{tpu_custom_call.1} parent=1 // pred_region
      %420 = dma.done [#allocation4], 128
    $region41: #{tpu_custom_call.1} parent=1 // pred_fallthru
      _
    %421 = vsyncpa [#allocation3], 1
    %422 = vsyncpa [#allocation6], 1
    %423 = vsyncpa [#allocation9], 1
    %424 = vsyncpa [#allocation4], 1

</llo_original>
